<compile_context>
chip_gen: v6e
topology: v6e:2x2x1
jax: 0.10.0
libtpu: 0.0.40
codegen_flags: <defaults>
</compile_context>

<pallas_src>
import functools

import jax
import jax.numpy as jnp
import numpy as np
from jax.experimental import pallas as pl
from jax.experimental.pallas import tpu as pltpu


# --------------------------- device-aware config ---------------------------- #

def _device_kind():
    try:
        return jax.devices()[0].device_kind.lower()
    except Exception:
        return ""


_KIND = _device_kind()
_IS_V7 = ("v7" in _KIND) or ("tpu7" in _KIND)      # 2 TensorCores, 64 MiB VMEM per TC
# v5e / v6e: single TensorCore, 128 MiB VMEM -> bigger tiles to cut patches re-reads.
_TM_MAX = 512 if _IS_V7 else 1024
_TN_MAX = 256 if _IS_V7 else 512
_TK_MAX = 512
_VMEM_CAP = (56 << 20) if _IS_V7 else (112 << 20)


def _round_up(x, m):
    return (x + m - 1) // m * m


def _pick_tile(padded, t_max):
    """Largest tile in {t_max, 512, 256, 128} that divides the 128-aligned padded extent."""
    for t in sorted({t_max, 512, 256, 128}, reverse=True):
        if t <= padded and t <= t_max and padded % t == 0:
            return t
    return 128


def _maybe_buffered_spec(shape, index_map, n_bufs):
    """BlockSpec with deeper pipelining when supported; plain double-buffering otherwise."""
    if n_bufs > 2 and hasattr(pl, "Buffered"):
        try:
            return pl.BlockSpec(shape, index_map, pipeline_mode=pl.Buffered(n_bufs))
        except TypeError:
            pass
    return pl.BlockSpec(shape, index_map)


# ----------------------------- Pallas kernels ------------------------------ #

def _matmul_bias_kernel(x_ref, w_ref, bias_ref, o_ref, acc_ref, *, relu):
    # Accumulator is seeded with the folded-BN bias (BN scale is folded into w_ref).
    @pl.when(pl.program_id(2) == 0)
    def _():
        acc_ref[...] = jnp.broadcast_to(bias_ref[...], acc_ref.shape)

    acc_ref[...] += jnp.dot(x_ref[...], w_ref[...], preferred_element_type=jnp.float32)

    @pl.when(pl.program_id(2) == pl.num_programs(2) - 1)
    def _():
        acc = acc_ref[...]
        if relu:
            acc = jnp.maximum(acc, 0.0)
        o_ref[...] = acc.astype(o_ref.dtype)


def _matmul_bias_res_kernel(x_ref, w_ref, bias_ref, res_ref, o_ref, acc_ref, *, relu):
    @pl.when(pl.program_id(2) == 0)
    def _():
        acc_ref[...] = jnp.broadcast_to(bias_ref[...], acc_ref.shape)

    acc_ref[...] += jnp.dot(x_ref[...], w_ref[...], preferred_element_type=jnp.float32)

    @pl.when(pl.program_id(2) == pl.num_programs(2) - 1)
    def _():
        acc = acc_ref[...] + res_ref[...].astype(jnp.float32)
        if relu:
            acc = jnp.maximum(acc, 0.0)
        o_ref[...] = acc.astype(o_ref.dtype)


def fused_conv_bn(x_patches, w_mat, scale, bias, residual=None, relu=True,
                  out_dtype=jnp.bfloat16):
    """(M,K)@(K,C) on the MXU (bf16 operands, f32 accum) + folded BN [+ residual] [+ ReLU].

    BN scale is folded into the weight matrix in f32 before the bf16 cast; the bias seeds
    the f32 VMEM accumulator at k == 0, so the kernel epilogue is just (+res)/ReLU/store.
    """
    M, K = x_patches.shape
    _, C = w_mat.shape

    # (8,128)-aligned padded extents and divisor-aware tile sizes (no padding inflation).
    Mp, Kp, Cp = _round_up(M, 128), _round_up(K, 128), _round_up(C, 128)
    tm = _pick_tile(Mp, _TM_MAX)
    tn = _pick_tile(Cp, _TN_MAX)
    tk = _pick_tile(Kp, _TK_MAX)

    # Only v7x has 2 TensorCores: give the parallel axes >= 2 grid steps there. Never go
    # below the bf16 (16,128) vreg packing granularity.
    if _IS_V7 and (Mp // tm) * (Cp // tn) == 1 and tm >= 32:
        tm //= 2

    def pad2(a, rows, cols):
        pr, pc = rows - a.shape[0], cols - a.shape[1]
        return a if (pr == 0 and pc == 0) else jnp.pad(a, ((0, pr), (0, pc)))

    w_folded = w_mat.astype(jnp.float32) * scale.astype(jnp.float32)[None, :]
    xp = pad2(x_patches.astype(jnp.bfloat16), Mp, Kp)
    wp = pad2(w_folded.astype(jnp.bfloat16), Kp, Cp)
    bp = pad2(bias.astype(jnp.float32).reshape(1, C), 1, Cp)

    n_k = Kp // tk
    lhs_bufs = 3 if (tk == 128 and n_k >= 3) else 2

    in_specs = [
        _maybe_buffered_spec((tm, tk), lambda i, j, k: (i, k), lhs_bufs),
        pl.BlockSpec((tk, tn), lambda i, j, k: (k, j)),
        pl.BlockSpec((1, tn), lambda i, j, k: (0, j)),
    ]
    args = [xp, wp, bp]

    if residual is not None:
        rp = pad2(residual.astype(jnp.bfloat16), Mp, Cp)
        in_specs.append(pl.BlockSpec((tm, tn), lambda i, j, k: (i, j)))
        args.append(rp)
        kernel = functools.partial(_matmul_bias_res_kernel, relu=relu)
        res_bufs = 2
    else:
        kernel = functools.partial(_matmul_bias_kernel, relu=relu)
        res_bufs = 0

    # Computed VMEM budget (double/triple-buffered tiles + f32 accumulator) with margin.
    out_bytes = jnp.dtype(out_dtype).itemsize
    footprint = (lhs_bufs * tm * tk * 2 + 2 * tk * tn * 2 + 2 * max(tn, 128) * 4
                 + res_bufs * tm * tn * 2 + 2 * tm * tn * out_bytes + tm * tn * 4)
    vmem_limit = int(min(max(footprint + (16 << 20), 32 << 20), _VMEM_CAP))

    out = pl.pallas_call(
        kernel,
        out_shape=jax.ShapeDtypeStruct((Mp, Cp), out_dtype),
        grid=(Mp // tm, Cp // tn, n_k),
        in_specs=in_specs,
        out_specs=pl.BlockSpec((tm, tn), lambda i, j, k: (i, j)),
        scratch_shapes=[pltpu.VMEM((tm, tn), jnp.float32)],
        compiler_params=pltpu.CompilerParams(
            dimension_semantics=("parallel", "parallel", "arbitrary"),
            vmem_limit_bytes=vmem_limit,
        ),
    )(*args)

    if Mp != M or Cp != C:
        out = out[:M, :C]
    return out


# ------------------------------- JAX glue ---------------------------------- #

def im2col(x_nhwc, k, stride, pad):
    """Returns (N*Ho*Wo, k*k*C) patches with (tap, channel) feature order, i.e. a simple
    concatenation of contiguous channel slabs (no lane-interleaving transpose)."""
    N, H, W, C = x_nhwc.shape
    xp = jnp.pad(x_nhwc, ((0, 0), (pad, pad), (pad, pad), (0, 0))) if pad else x_nhwc
    Ho = (H + 2 * pad - k) // stride + 1
    Wo = (W + 2 * pad - k) // stride + 1
    cols = []
    for ki in range(k):
        for kj in range(k):
            cols.append(xp[:, ki:ki + stride * Ho:stride, kj:kj + stride * Wo:stride, :])
    patches = jnp.concatenate(cols, axis=-1)                 # (N, Ho, Wo, k*k*C)
    return patches.reshape(N * Ho * Wo, k * k * C), Ho, Wo


def _conv_weight_matrix(w_oihw):
    """OIHW -> (kh, kw, Cin, Cout) -> (kh*kw*Cin, Cout): matches im2col (tap, c) order."""
    cout = w_oihw.shape[0]
    return jnp.transpose(w_oihw, (2, 3, 1, 0)).reshape(-1, cout)


def fold_bn(bn, eps=1e-5):
    scale = bn["gamma"] / jnp.sqrt(bn["var"] + eps)
    bias = bn["beta"] - bn["mean"] * scale
    return scale, bias


def slimmable_basic_block_forward(x_nchw, params, stride):
    # NHWC bf16 activations between the three pallas calls (half the HBM traffic).
    x = jnp.transpose(x_nchw, (0, 2, 3, 1)).astype(jnp.bfloat16)
    N, H, W, Cin = x.shape
    Cout = params["conv1_w"].shape[0]

    # conv1 (3x3, stride) -> bn1 -> relu
    p1, Ho, Wo = im2col(x, 3, stride, 1)
    w1 = _conv_weight_matrix(params["conv1_w"])
    s1, b1 = fold_bn(params["bn1"])
    out1 = fused_conv_bn(p1, w1, s1, b1, residual=None, relu=True, out_dtype=jnp.bfloat16)
    out1_img = out1.reshape(N, Ho, Wo, Cout)

    # shortcut
    if stride != 1 or Cin != Cout:
        ps, _, _ = im2col(x, 1, stride, 0)
        ws = _conv_weight_matrix(params["sc_w"])
        ss, bs = fold_bn(params["bn_sc"])
        shortcut = fused_conv_bn(ps, ws, ss, bs, residual=None, relu=False,
                                 out_dtype=jnp.bfloat16)
    else:
        # NOTE: identity shortcut intentionally kept in bf16 (consistent with bf16 MXU
        # operands); tolerance below accounts for this.
        shortcut = x.reshape(N * H * W, Cin)

    # conv2 (3x3, stride 1) -> bn2 -> (+shortcut) -> relu, bf16 writeback
    p2, _, _ = im2col(out1_img, 3, 1, 1)
    w2 = _conv_weight_matrix(params["conv2_w"])
    s2, b2 = fold_bn(params["bn2"])
    out2 = fused_conv_bn(p2, w2, s2, b2, residual=shortcut, relu=True,
                         out_dtype=jnp.bfloat16)

    out_img = out2.reshape(N, Ho, Wo, Cout)
    return jnp.transpose(out_img, (0, 3, 1, 2)).astype(jnp.float32)   # back to NCHW f32


# -------------------------- pure-JAX reference ------------------------------ #

def _conv_ref(x_nchw, w_oihw, stride, pad):
    return jax.lax.conv_general_dilated(
        x_nchw, w_oihw, window_strides=(stride, stride),
        padding=((pad, pad), (pad, pad)),
        dimension_numbers=("NCHW", "OIHW", "NCHW"))


def _bn_ref(x_nchw, bn, eps=1e-5):
    s, b = fold_bn(bn)
    return x_nchw * s[None, :, None, None] + b[None, :, None, None]


def reference_forward(x, params, stride):
    out = jax.nn.relu(_bn_ref(_conv_ref(x, params["conv1_w"], stride, 1), params["bn1"]))
    out = _bn_ref(_conv_ref(out, params["conv2_w"], 1, 1), params["bn2"])
    Cin, Cout = x.shape[1], params["conv1_w"].shape[0]
    if stride != 1 or Cin != Cout:
        sc = _bn_ref(_conv_ref(x, params["sc_w"], stride, 0), params["bn_sc"])
    else:
        sc = x
    return jax.nn.relu(out + sc)


# --------------------------------- main ------------------------------------ #

def make_params(key, cin, cout):
    ks = jax.random.split(key, 16)

    def bn_params(k0, k1, k2, k3, c):
        return {
            "gamma": 1.0 + 0.1 * jax.random.normal(k0, (c,), jnp.float32),
            "beta": 0.1 * jax.random.normal(k1, (c,), jnp.float32),
            "mean": 0.1 * jax.random.normal(k2, (c,), jnp.float32),
            "var": 0.5 + jnp.abs(jax.random.normal(k3, (c,), jnp.float32)) * 0.5,
        }

    return {
        "conv1_w": 0.1 * jax.random.normal(ks[0], (cout, cin, 3, 3), jnp.float32),
        "conv2_w": 0.1 * jax.random.normal(ks[1], (cout, cout, 3, 3), jnp.float32),
        "sc_w": 0.1 * jax.random.normal(ks[2], (cout, cin, 1, 1), jnp.float32),
        "bn1": bn_params(ks[3], ks[4], ks[5], ks[6], cout),
        "bn2": bn_params(ks[7], ks[8], ks[9], ks[10], cout),
        "bn_sc": bn_params(ks[11], ks[12], ks[13], ks[14], cout),
    }


if __name__ == "__main__":
    key = jax.random.PRNGKey(0)
    k_x, k_p = jax.random.split(key)

    # Slimmable block instantiated at max width: in_planes=4, out_planes=8, stride=2
    # (stride != 1 and in != out -> shortcut = 1x1 conv + BN).
    N, Cin, H, W = 2, 4, 16, 16
    Cout, stride = 8, 2

    x = jax.random.normal(k_x, (N, Cin, H, W), jnp.float32)
    params = make_params(k_p, Cin, Cout)

    out = slimmable_basic_block_forward(x, params, stride)
    out = jax.block_until_ready(out)

    ref = jax.block_until_ready(reference_forward(x, params, stride))

    assert out.shape == (N, Cout, H // stride, W // stride), out.shape
    # bf16 MXU operands + bf16 writeback -> looser tolerance than a pure-f32 pipeline.
    np.testing.assert_allclose(np.asarray(out), np.asarray(ref), atol=5e-2, rtol=5e-2)
    print("KERNEL_OK")
</pallas_src>

<mosaic_0001>
module attributes {stable_mosaic.version = 11 : i64} {
  func.func @_matmul_bias_kernel(%arg0: i32, %arg1: i32, %arg2: i32, %arg3: memref<128x128xbf16, #tpu.memory_space<vmem>>, %arg4: memref<128x128xbf16, #tpu.memory_space<vmem>>, %arg5: memref<1x128xf32, #tpu.memory_space<vmem>>, %arg6: memref<128x128xbf16, #tpu.memory_space<vmem>>, %arg7: memref<128x128xf32, #tpu.memory_space<vmem>>) attributes {dimension_semantics = [#tpu.dimension_semantics<parallel>, #tpu.dimension_semantics<parallel>, #tpu.dimension_semantics<arbitrary>], iteration_bounds = array<i64: 1, 1, 1>, scalar_prefetch = 0 : i64, scratch_operands = 1 : i64, tpu.core_type = #tpu.core_type<tc>, window_params = [{transform_indices = @transform_0, window_bounds = array<i64: 128, 128>}, {transform_indices = @transform_1, window_bounds = array<i64: 128, 128>}, {transform_indices = @transform_2, window_bounds = array<i64: 1, 128>}, {transform_indices = @transform_3, window_bounds = array<i64: 128, 128>}]} {
    %c0_i32 = arith.constant 0 : i32
    %0 = arith.cmpi eq, %arg2, %c0_i32 : i32
    %1 = arith.extui %0 : i1 to i32
    %c0_i32_0 = arith.constant 0 : i32
    %2 = arith.cmpi ne, %1, %c0_i32_0 : i32
    scf.if %2 {
      %c0_10 = arith.constant 0 : index
      %c0_11 = arith.constant 0 : index
      %12 = vector.load %arg5[%c0_10, %c0_11] : memref<1x128xf32, #tpu.memory_space<vmem>>, vector<1x128xf32>
      %13 = vector.shape_cast %12 : vector<1x128xf32> to vector<1x128xf32>
      %14 = vector.broadcast %13 : vector<1x128xf32> to vector<128x128xf32>
      %c0_12 = arith.constant 0 : index
      %c0_13 = arith.constant 0 : index
      %15 = vector.load %arg7[%c0_12, %c0_13] : memref<128x128xf32, #tpu.memory_space<vmem>>, vector<128x128xf32>
      tpu.vector_store %arg7[%c0_12, %c0_13], %14 {strides = array<i32>} : memref<128x128xf32, #tpu.memory_space<vmem>>, vector<128x128xf32>,
    } else {
    }
    %c0 = arith.constant 0 : index
    %c0_1 = arith.constant 0 : index
    %3 = vector.load %arg7[%c0, %c0_1] : memref<128x128xf32, #tpu.memory_space<vmem>>, vector<128x128xf32>
    %c0_2 = arith.constant 0 : index
    %c0_3 = arith.constant 0 : index
    %4 = vector.load %arg3[%c0_2, %c0_3] : memref<128x128xbf16, #tpu.memory_space<vmem>>, vector<128x128xbf16>
    %c0_4 = arith.constant 0 : index
    %c0_5 = arith.constant 0 : index
    %5 = vector.load %arg4[%c0_4, %c0_5] : memref<128x128xbf16, #tpu.memory_space<vmem>>, vector<128x128xbf16>
    %cst = arith.constant dense<0.000000e+00> : vector<128x128xf32>
    %6 = tpu.matmul %4, %5, %cst {dimension_numbers = #tpu.dot_dimension_numbers<[1], [0], [0], [1], [0, 0, 1, 1], [], []>} : vector<128x128xbf16>, vector<128x128xbf16>, vector<128x128xf32> -> vector<128x128xf32>
    %7 = arith.addf %3, %6 : vector<128x128xf32>
    %c0_6 = arith.constant 0 : index
    %c0_7 = arith.constant 0 : index
    %8 = vector.load %arg7[%c0_6, %c0_7] : memref<128x128xf32, #tpu.memory_space<vmem>>, vector<128x128xf32>
    tpu.vector_store %arg7[%c0_6, %c0_7], %7 {strides = array<i32>} : memref<128x128xf32, #tpu.memory_space<vmem>>, vector<128x128xf32>,
    %c0_i32_8 = arith.constant 0 : i32
    %9 = arith.cmpi eq, %arg2, %c0_i32_8 : i32
    %10 = arith.extui %9 : i1 to i32
    %c0_i32_9 = arith.constant 0 : i32
    %11 = arith.cmpi ne, %10, %c0_i32_9 : i32
    scf.if %11 {
      %c0_10 = arith.constant 0 : index
      %c0_11 = arith.constant 0 : index
      %12 = vector.load %arg7[%c0_10, %c0_11] : memref<128x128xf32, #tpu.memory_space<vmem>>, vector<128x128xf32>
      %cst_12 = arith.constant 0.000000e+00 : f32
      %13 = vector.broadcast %cst_12 : f32 to vector<128x128xf32>
      %14 = arith.maximumf %12, %13 : vector<128x128xf32>
      %15 = arith.truncf %14 : vector<128x128xf32> to vector<128x128xbf16>
      %c0_13 = arith.constant 0 : index
      %c0_14 = arith.constant 0 : index
      %16 = vector.load %arg6[%c0_13, %c0_14] : memref<128x128xbf16, #tpu.memory_space<vmem>>, vector<128x128xbf16>
      tpu.vector_store %arg6[%c0_13, %c0_14], %15 {strides = array<i32>} : memref<128x128xbf16, #tpu.memory_space<vmem>>, vector<128x128xbf16>,
    } else {
    }
    return
  }
  func.func @transform_0(%arg0: i32, %arg1: i32, %arg2: i32) -> (i32, i32) {
    %c0_i32 = arith.constant 0 : i32
    return %arg0, %arg2 : i32, i32
  }
  func.func @transform_1(%arg0: i32, %arg1: i32, %arg2: i32) -> (i32, i32) {
    %c0_i32 = arith.constant 0 : i32
    return %arg2, %arg1 : i32, i32
  }
  func.func @transform_2(%arg0: i32, %arg1: i32, %arg2: i32) -> (i32, i32) {
    %c0_i32 = arith.constant 0 : i32
    %c0_i32_0 = arith.constant 0 : i32
    return %c0_i32, %arg1 : i32, i32
  }
  func.func @transform_3(%arg0: i32, %arg1: i32, %arg2: i32) -> (i32, i32) {
    %c0_i32 = arith.constant 0 : i32
    return %arg0, %arg1 : i32, i32
  }
}

</mosaic_0001>

<llo_original>
// kernel: tpu_custom_call.1
$region0: #{tpu_custom_call.1}
  #allocation0 [shape = 'u32[]', space=smem, size = 0x4, offset = 0x4, fixed_abs, tag = 'smem constant byte address 0x4 - core index']
  #allocation1 [shape = 'u32[144,128]{1,0:T(1,128)}', space=vmem, size = 0x12000, scoped, tag = 'internal scratch']
  #allocation2 [shape = 'f32[128,128]{1,0:T(8,128)}', space=vmem, size = 0x10000, scoped, tag = 'scratch operand']
  %s0 = inlined_call_operand.hbm [shape: bf16[128,128], index: 0, kind: input, shape index: {}]
  %s1 = inlined_call_operand.hbm [shape: bf16[128,128], index: 1, kind: input, shape index: {}]
  %s2 = inlined_call_operand.vmem [shape: f32[1,128], index: 2, kind: input, shape index: {}]
  %s3 = inlined_call_operand.hbm [shape: bf16[128,128], index: 3, kind: output, shape index: {}]
  %s4 = sld [smem:[#allocation0]]
  $region38: #{tpu_custom_call.1} parent=0
    _
  %s6 = ssub.s32 1, %s4
  %s7 = scalar_select 0, %s6, %s4
  $region1: #{tpu_custom_call.1} parent=0
    #allocation3 [shape = 'u8[32768]{0}', space=vmem, size = 0x8000, scoped, tag = 'input window, operand 0, single buffered']
    #allocation4 [shape = 's32[1]{0}', space=sflag, size = 0x4, scoped, tag = 'scoped memory for tpu_custom_call.1']
    #allocation5 [shape = 's32[1]{0}', space=sflag, size = 0x4, scoped, tag = 'scoped memory for tpu_custom_call.1']
    #allocation6 [shape = 'u8[32768]{0}', space=vmem, size = 0x8000, scoped, tag = 'input window, operand 1, single buffered']
    #allocation7 [shape = 's32[1]{0}', space=sflag, size = 0x4, scoped, tag = 'scoped memory for tpu_custom_call.1']
    #allocation8 [shape = 'u8[32768]{0}', space=vmem, size = 0x8000, scoped, tag = 'output window, operand 0, single buffered']
    %8 = vsyncpa [#allocation4], 0
    %9 = vsyncpa [#allocation7], 0
    %10 = vsyncpa [#allocation5], 0
    // Predicated region
    $region2: #{tpu_custom_call.1} parent=1 // pred_check
      _
    $region3: #{tpu_custom_call.1} parent=1 // pred_check_branch
      %12 = sbr.rel (0) target = $region5
    $region4: #{tpu_custom_call.1} parent=1 // pred_region
      %s14 = ssub.s32 1024, 1024
      %15 = vsyncadd [#allocation4], %s14
      %s16 = sshll.u32 [#allocation3], 4
      %s17 = int_to_ptr.vmem [resolvable:$true] %s16
      %22 = dma.hbm_to_vmem [thread:$0]  %s0, 1024, %s17, [#allocation4], 64, 64, 4
    $region5: #{tpu_custom_call.1} parent=1 // pred_fallthru
      _
    // Predicated region
    $region6: #{tpu_custom_call.1} parent=1 // pred_check
      _
    $region7: #{tpu_custom_call.1} parent=1 // pred_check_branch
      %24 = sbr.rel (0) target = $region9
    $region8: #{tpu_custom_call.1} parent=1 // pred_region
      %s26 = ssub.s32 1024, 1024
      %27 = vsyncadd [#allocation7], %s26
      %s28 = sshll.u32 [#allocation6], 4
      %s29 = int_to_ptr.vmem [resolvable:$true] %s28
      %34 = dma.hbm_to_vmem [thread:$0]  %s1, 1024, %s29, [#allocation7], 64, 64, 4
    $region9: #{tpu_custom_call.1} parent=1 // pred_fallthru
      _
    // Predicated region
    $region10: #{tpu_custom_call.1} parent=1 // pred_check
      _
    $region11: #{tpu_custom_call.1} parent=1 // pred_check_branch
      %36 = sbr.rel (0) target = $region13
    $region12: #{tpu_custom_call.1} parent=1 // pred_region
      _
    $region13: #{tpu_custom_call.1} parent=1 // pred_fallthru
      _
    // Predicated region
    $region14: #{tpu_custom_call.1} parent=1 // pred_check
      _
    $region15: #{tpu_custom_call.1} parent=1 // pred_check_branch
      %38 = sbr.rel (0) target = $region17
    $region16: #{tpu_custom_call.1} parent=1 // pred_region
      %39 = dma.done [#allocation4], 1024
    $region17: #{tpu_custom_call.1} parent=1 // pred_fallthru
      _
    // Predicated region
    $region18: #{tpu_custom_call.1} parent=1 // pred_check
      _
    $region19: #{tpu_custom_call.1} parent=1 // pred_check_branch
      %41 = sbr.rel (0) target = $region21
    $region20: #{tpu_custom_call.1} parent=1 // pred_region
      %42 = dma.done [#allocation7], 1024
    $region21: #{tpu_custom_call.1} parent=1 // pred_fallthru
      _
    %p44 = scmp.eq.s32.totalorder 0, 0
    // Predicated region
    $region22: #{tpu_custom_call.1} parent=1 // pred_check
      %p45 = pneg %p44
    $region23: #{tpu_custom_call.1} parent=1 // pred_check_branch
      %47 = sbr.rel (%p45) target = $region25
    $region24: #{tpu_custom_call.1} parent=1 // pred_region
      %v48 = vld [vmem:[%s2] sm:$0x1]
      %v50 = vlaneseq
      %v51 = vshrl.u32 %v50, 7
      %v52 = vsub.s32 0, %v51
      %v53 = vrot.slane %v48, %v52
      %55 = vst [vmem:[#allocation2] sm:$0xff] %v53
      %56 = vst [vmem:[#allocation2 + $0x8] sm:$0xff] %v53
      %57 = vst [vmem:[#allocation2 + $0x10] sm:$0xff] %v53
      %58 = vst [vmem:[#allocation2 + $0x18] sm:$0xff] %v53
      %59 = vst [vmem:[#allocation2 + $0x20] sm:$0xff] %v53
      %60 = vst [vmem:[#allocation2 + $0x28] sm:$0xff] %v53
      %61 = vst [vmem:[#allocation2 + $0x30] sm:$0xff] %v53
      %62 = vst [vmem:[#allocation2 + $0x38] sm:$0xff] %v53
      %63 = vst [vmem:[#allocation2 + $0x40] sm:$0xff] %v53
      %64 = vst [vmem:[#allocation2 + $0x48] sm:$0xff] %v53
      %65 = vst [vmem:[#allocation2 + $0x50] sm:$0xff] %v53
      %66 = vst [vmem:[#allocation2 + $0x58] sm:$0xff] %v53
      %67 = vst [vmem:[#allocation2 + $0x60] sm:$0xff] %v53
      %68 = vst [vmem:[#allocation2 + $0x68] sm:$0xff] %v53
      %69 = vst [vmem:[#allocation2 + $0x70] sm:$0xff] %v53
      %70 = vst [vmem:[#allocation2 + $0x78] sm:$0xff] %v53
    $region25: #{tpu_custom_call.1} parent=1 // pred_fallthru
      _
    %v71 = vld [vmem:[#allocation2] sm:$0xff]
    %v72 = vld [vmem:[#allocation2 + $0x8] sm:$0xff]
    %v73 = vld [vmem:[#allocation2 + $0x10] sm:$0xff]
    %v74 = vld [vmem:[#allocation2 + $0x18] sm:$0xff]
    %v75 = vld [vmem:[#allocation2 + $0x20] sm:$0xff]
    %v76 = vld [vmem:[#allocation2 + $0x28] sm:$0xff]
    %v77 = vld [vmem:[#allocation2 + $0x30] sm:$0xff]
    %v78 = vld [vmem:[#allocation2 + $0x38] sm:$0xff]
    %v79 = vld [vmem:[#allocation2 + $0x40] sm:$0xff]
    %v80 = vld [vmem:[#allocation2 + $0x48] sm:$0xff]
    %v81 = vld [vmem:[#allocation2 + $0x50] sm:$0xff]
    %v82 = vld [vmem:[#allocation2 + $0x58] sm:$0xff]
    %v83 = vld [vmem:[#allocation2 + $0x60] sm:$0xff]
    %v84 = vld [vmem:[#allocation2 + $0x68] sm:$0xff]
    %v85 = vld [vmem:[#allocation2 + $0x70] sm:$0xff]
    %v86 = vld [vmem:[#allocation2 + $0x78] sm:$0xff]
    %v87 = vld [vmem:[#allocation3] sm:$0xf]
    %v88 = vld [vmem:[#allocation3 + $0x4] sm:$0xf]
    %v89 = vld [vmem:[#allocation3 + $0x8] sm:$0xf]
    %v90 = vld [vmem:[#allocation3 + $0xc] sm:$0xf]
    %v91 = vld [vmem:[#allocation3 + $0x10] sm:$0xf]
    %v92 = vld [vmem:[#allocation3 + $0x14] sm:$0xf]
    %v93 = vld [vmem:[#allocation3 + $0x18] sm:$0xf]
    %v94 = vld [vmem:[#allocation3 + $0x1c] sm:$0xf]
    %v95 = vld [vmem:[#allocation3 + $0x20] sm:$0xf]
    %v96 = vld [vmem:[#allocation3 + $0x24] sm:$0xf]
    %v97 = vld [vmem:[#allocation3 + $0x28] sm:$0xf]
    %v98 = vld [vmem:[#allocation3 + $0x2c] sm:$0xf]
    %v99 = vld [vmem:[#allocation3 + $0x30] sm:$0xf]
    %v100 = vld [vmem:[#allocation3 + $0x34] sm:$0xf]
    %v101 = vld [vmem:[#allocation3 + $0x38] sm:$0xf]
    %v102 = vld [vmem:[#allocation3 + $0x3c] sm:$0xf]
    %v103 = vld [vmem:[#allocation6] sm:$0xf]
    %v104 = vld [vmem:[#allocation6 + $0x4] sm:$0xf]
    %v105 = vld [vmem:[#allocation6 + $0x8] sm:$0xf]
    %v106 = vld [vmem:[#allocation6 + $0xc] sm:$0xf]
    %v107 = vld [vmem:[#allocation6 + $0x10] sm:$0xf]
    %v108 = vld [vmem:[#allocation6 + $0x14] sm:$0xf]
    %v109 = vld [vmem:[#allocation6 + $0x18] sm:$0xf]
    %v110 = vld [vmem:[#allocation6 + $0x1c] sm:$0xf]
    %v111 = vld [vmem:[#allocation6 + $0x20] sm:$0xf]
    %v112 = vld [vmem:[#allocation6 + $0x24] sm:$0xf]
    %v113 = vld [vmem:[#allocation6 + $0x28] sm:$0xf]
    %v114 = vld [vmem:[#allocation6 + $0x2c] sm:$0xf]
    %v115 = vld [vmem:[#allocation6 + $0x30] sm:$0xf]
    %v116 = vld [vmem:[#allocation6 + $0x34] sm:$0xf]
    %v117 = vld [vmem:[#allocation6 + $0x38] sm:$0xf]
    %v118 = vld [vmem:[#allocation6 + $0x3c] sm:$0xf]
    %v135 = vunpack.c.l.b16 %v87
    %v136 = vunpack.c.l.b16 %v88
    %v137 = vunpack.c.l.b16 %v89
    %v138 = vunpack.c.l.b16 %v90
    %v139 = vunpack.c.l.b16 %v91
    %v140 = vunpack.c.l.b16 %v92
    %v141 = vunpack.c.l.b16 %v93
    %v142 = vunpack.c.l.b16 %v94
    %v143 = vunpack.c.l.b16 %v95
    %v144 = vunpack.c.l.b16 %v96
    %v145 = vunpack.c.l.b16 %v97
    %v146 = vunpack.c.l.b16 %v98
    %v147 = vunpack.c.l.b16 %v99
    %v148 = vunpack.c.l.b16 %v100
    %v149 = vunpack.c.l.b16 %v101
    %v150 = vunpack.c.l.b16 %v102
    %v151 = vpack.c.b16 %v136, %v135
    %v152 = vpack.c.b16 %v138, %v137
    %v153 = vpack.c.b16 %v140, %v139
    %v154 = vpack.c.b16 %v142, %v141
    %v155 = vpack.c.b16 %v144, %v143
    %v156 = vpack.c.b16 %v146, %v145
    %v157 = vpack.c.b16 %v148, %v147
    %v158 = vpack.c.b16 %v150, %v149
    %v183 = vunpack.c.l.b16 %v103
    %v184 = vunpack.c.l.b16 %v104
    %v185 = vunpack.c.l.b16 %v105
    %v186 = vunpack.c.l.b16 %v106
    %v187 = vunpack.c.l.b16 %v107
    %v188 = vunpack.c.l.b16 %v108
    %v189 = vunpack.c.l.b16 %v109
    %v190 = vunpack.c.l.b16 %v110
    %v191 = vunpack.c.l.b16 %v111
    %v192 = vunpack.c.l.b16 %v112
    %v193 = vunpack.c.l.b16 %v113
    %v194 = vunpack.c.l.b16 %v114
    %v195 = vunpack.c.l.b16 %v115
    %v196 = vunpack.c.l.b16 %v116
    %v197 = vunpack.c.l.b16 %v117
    %v198 = vunpack.c.l.b16 %v118
    %v199 = vpack.c.b16 %v184, %v183
    %v200 = vpack.c.b16 %v186, %v185
    %v201 = vpack.c.b16 %v188, %v187
    %v202 = vpack.c.b16 %v190, %v189
    %v203 = vpack.c.b16 %v192, %v191
    %v204 = vpack.c.b16 %v194, %v193
    %v205 = vpack.c.b16 %v196, %v195
    %v206 = vpack.c.b16 %v198, %v197
    %215 = vmatprep.subr.bf16.mxu0 0
    %216 = vmatpush1.bf16.msra.mxu0 %v206
    %217 = vmatprep.subr.bf16.mxu0 0
    %218 = vmatpush1.bf16.msra.mxu0 %v205
    %219 = vmatprep.subr.bf16.mxu0 0
    %220 = vmatpush1.bf16.msra.mxu0 %v204
    %221 = vmatprep.subr.bf16.mxu0 0
    %222 = vmatpush1.bf16.msra.mxu0 %v203
    %223 = vmatprep.subr.bf16.mxu0 0
    %224 = vmatpush1.bf16.msra.mxu0 %v202
    %225 = vmatprep.subr.bf16.mxu0 0
    %226 = vmatpush1.bf16.msra.mxu0 %v201
    %227 = vmatprep.subr.bf16.mxu0 0
    %228 = vmatpush1.bf16.msra.mxu0 %v200
    %229 = vmatprep.subr.bf16.mxu0 0
    %230 = vmatpush1.bf16.msra.mxu0 %v199
    %231 = vmatprep.subr.bf16.mxu0 0
    %232 = vmatpush2.bf16.msra.mxu0 0
    %233 = vmatprep.subr.bf16.mxu0 0
    %234 = vmatpush2.bf16.msra.mxu0 0
    %235 = vmatprep.subr.bf16.mxu0 0
    %236 = vmatpush2.bf16.msra.mxu0 0
    %237 = vmatprep.subr.bf16.mxu0 0
    %238 = vmatpush2.bf16.msra.mxu0 0
    %239 = vmatprep.subr.bf16.mxu0 0
    %240 = vmatpush2.bf16.msra.mxu0 0
    %241 = vmatprep.subr.bf16.mxu0 0
    %242 = vmatpush2.bf16.msra.mxu0 0
    %243 = vmatprep.subr.bf16.mxu0 0
    %244 = vmatpush2.bf16.msra.mxu0 0
    %245 = vmatprep.subr.bf16.mxu0 0
    %246 = vmatpush2.bf16.msra.mxu0 0
    %247 = vmatprep.mubr.bf16.mxu0 0
    %248 = vmatmul.mubr.bf16.gmra.mxu0 %v151
    %v249 = vpop.f32.mrf.mxu0
    %v250 = vadd.f32 0.0, %v249
    %v251 = vpop.f32.mrf.mxu0
    %v252 = vpop.f32.mrf.mxu0
    %v253 = vadd.f32 0.0, %v252
    %v254 = vpop.f32.mrf.mxu0
    %255 = vmatprep.mubr.bf16.mxu0 0
    %256 = vmatmul.mubr.bf16.gmra.mxu0 %v152
    %v257 = vpop.f32.mrf.mxu0
    %v258 = vadd.f32 0.0, %v257
    %v259 = vpop.f32.mrf.mxu0
    %v260 = vpop.f32.mrf.mxu0
    %v261 = vadd.f32 0.0, %v260
    %v262 = vpop.f32.mrf.mxu0
    %263 = vmatprep.mubr.bf16.mxu0 0
    %264 = vmatmul.mubr.bf16.gmra.mxu0 %v153
    %v265 = vpop.f32.mrf.mxu0
    %v266 = vadd.f32 0.0, %v265
    %v267 = vpop.f32.mrf.mxu0
    %v268 = vpop.f32.mrf.mxu0
    %v269 = vadd.f32 0.0, %v268
    %v270 = vpop.f32.mrf.mxu0
    %271 = vmatprep.mubr.bf16.mxu0 0
    %272 = vmatmul.mubr.bf16.gmra.mxu0 %v154
    %v273 = vpop.f32.mrf.mxu0
    %v274 = vadd.f32 0.0, %v273
    %v275 = vpop.f32.mrf.mxu0
    %v276 = vpop.f32.mrf.mxu0
    %v277 = vadd.f32 0.0, %v276
    %v278 = vpop.f32.mrf.mxu0
    %279 = vmatprep.mubr.bf16.mxu0 0
    %280 = vmatmul.mubr.bf16.gmra.mxu0 %v155
    %v281 = vpop.f32.mrf.mxu0
    %v282 = vadd.f32 0.0, %v281
    %v283 = vpop.f32.mrf.mxu0
    %v284 = vpop.f32.mrf.mxu0
    %v285 = vadd.f32 0.0, %v284
    %v286 = vpop.f32.mrf.mxu0
    %287 = vmatprep.mubr.bf16.mxu0 0
    %288 = vmatmul.mubr.bf16.gmra.mxu0 %v156
    %v289 = vpop.f32.mrf.mxu0
    %v290 = vadd.f32 0.0, %v289
    %v291 = vpop.f32.mrf.mxu0
    %v292 = vpop.f32.mrf.mxu0
    %v293 = vadd.f32 0.0, %v292
    %v294 = vpop.f32.mrf.mxu0
    %295 = vmatprep.mubr.bf16.mxu0 0
    %296 = vmatmul.mubr.bf16.gmra.mxu0 %v157
    %v297 = vpop.f32.mrf.mxu0
    %v298 = vadd.f32 0.0, %v297
    %v299 = vpop.f32.mrf.mxu0
    %v300 = vpop.f32.mrf.mxu0
    %v301 = vadd.f32 0.0, %v300
    %v302 = vpop.f32.mrf.mxu0
    %303 = vmatprep.mubr.bf16.mxu0 0
    %304 = vmatmul.mubr.bf16.gmra.mxu0 %v158
    %v305 = vpop.f32.mrf.mxu0
    %v306 = vadd.f32 0.0, %v305
    %v307 = vpop.f32.mrf.mxu0
    %v308 = vpop.f32.mrf.mxu0
    %v309 = vadd.f32 0.0, %v308
    %v310 = vpop.f32.mrf.mxu0
    %311 = vdwg.mxu0
    %v312 = vadd.f32 %v71, %v250
    %v313 = vadd.f32 %v72, %v253
    %v314 = vadd.f32 %v73, %v258
    %v315 = vadd.f32 %v74, %v261
    %v316 = vadd.f32 %v75, %v266
    %v317 = vadd.f32 %v76, %v269
    %v318 = vadd.f32 %v77, %v274
    %v319 = vadd.f32 %v78, %v277
    %v320 = vadd.f32 %v79, %v282
    %v321 = vadd.f32 %v80, %v285
    %v322 = vadd.f32 %v81, %v290
    %v323 = vadd.f32 %v82, %v293
    %v324 = vadd.f32 %v83, %v298
    %v325 = vadd.f32 %v84, %v301
    %v326 = vadd.f32 %v85, %v306
    %v327 = vadd.f32 %v86, %v309
    %328 = vst [vmem:[#allocation2] sm:$0xff] %v312
    %329 = vst [vmem:[#allocation2 + $0x8] sm:$0xff] %v313
    %330 = vst [vmem:[#allocation2 + $0x10] sm:$0xff] %v314
    %331 = vst [vmem:[#allocation2 + $0x18] sm:$0xff] %v315
    %332 = vst [vmem:[#allocation2 + $0x20] sm:$0xff] %v316
    %333 = vst [vmem:[#allocation2 + $0x28] sm:$0xff] %v317
    %334 = vst [vmem:[#allocation2 + $0x30] sm:$0xff] %v318
    %335 = vst [vmem:[#allocation2 + $0x38] sm:$0xff] %v319
    %336 = vst [vmem:[#allocation2 + $0x40] sm:$0xff] %v320
    %337 = vst [vmem:[#allocation2 + $0x48] sm:$0xff] %v321
    %338 = vst [vmem:[#allocation2 + $0x50] sm:$0xff] %v322
    %339 = vst [vmem:[#allocation2 + $0x58] sm:$0xff] %v323
    %340 = vst [vmem:[#allocation2 + $0x60] sm:$0xff] %v324
    %341 = vst [vmem:[#allocation2 + $0x68] sm:$0xff] %v325
    %342 = vst [vmem:[#allocation2 + $0x70] sm:$0xff] %v326
    %343 = vst [vmem:[#allocation2 + $0x78] sm:$0xff] %v327
    // Predicated region
    $region26: #{tpu_custom_call.1} parent=1 // pred_check
      %p344 = pneg %p44
    $region27: #{tpu_custom_call.1} parent=1 // pred_check_branch
      %346 = sbr.rel (%p344) target = $region29
    $region28: #{tpu_custom_call.1} parent=1 // pred_region
      %v347 = vld [vmem:[#allocation2] sm:$0xff]
      %v348 = vld [vmem:[#allocation2 + $0x8] sm:$0xff]
      %v349 = vld [vmem:[#allocation2 + $0x10] sm:$0xff]
      %v350 = vld [vmem:[#allocation2 + $0x18] sm:$0xff]
      %v351 = vld [vmem:[#allocation2 + $0x20] sm:$0xff]
      %v352 = vld [vmem:[#allocation2 + $0x28] sm:$0xff]
      %v353 = vld [vmem:[#allocation2 + $0x30] sm:$0xff]
      %v354 = vld [vmem:[#allocation2 + $0x38] sm:$0xff]
      %v355 = vld [vmem:[#allocation2 + $0x40] sm:$0xff]
      %v356 = vld [vmem:[#allocation2 + $0x48] sm:$0xff]
      %v357 = vld [vmem:[#allocation2 + $0x50] sm:$0xff]
      %v358 = vld [vmem:[#allocation2 + $0x58] sm:$0xff]
      %v359 = vld [vmem:[#allocation2 + $0x60] sm:$0xff]
      %v360 = vld [vmem:[#allocation2 + $0x68] sm:$0xff]
      %v361 = vld [vmem:[#allocation2 + $0x70] sm:$0xff]
      %v362 = vld [vmem:[#allocation2 + $0x78] sm:$0xff]
      %v363 = vmax.f32 %v347, 0.0
      %v364 = vmax.f32 %v348, 0.0
      %v365 = vmax.f32 %v349, 0.0
      %v366 = vmax.f32 %v350, 0.0
      %v367 = vmax.f32 %v351, 0.0
      %v368 = vmax.f32 %v352, 0.0
      %v369 = vmax.f32 %v353, 0.0
      %v370 = vmax.f32 %v354, 0.0
      %v371 = vmax.f32 %v355, 0.0
      %v372 = vmax.f32 %v356, 0.0
      %v373 = vmax.f32 %v357, 0.0
      %v374 = vmax.f32 %v358, 0.0
      %v375 = vmax.f32 %v359, 0.0
      %v376 = vmax.f32 %v360, 0.0
      %v377 = vmax.f32 %v361, 0.0
      %v378 = vmax.f32 %v362, 0.0
      %v379 = vpack.c.bf16 %v364, %v363
      %v380 = vpack.c.bf16 %v366, %v365
      %v381 = vpack.c.bf16 %v368, %v367
      %v382 = vpack.c.bf16 %v370, %v369
      %v383 = vpack.c.bf16 %v372, %v371
      %v384 = vpack.c.bf16 %v374, %v373
      %v385 = vpack.c.bf16 %v376, %v375
      %v386 = vpack.c.bf16 %v378, %v377
      %v395 = vunpack.c.l.b16 %v379
      %v396 = vunpack.c.h.b16 %v379
      %v397 = vunpack.c.l.b16 %v380
      %v398 = vunpack.c.h.b16 %v380
      %v399 = vunpack.c.l.b16 %v381
      %v400 = vunpack.c.h.b16 %v381
      %v401 = vunpack.c.l.b16 %v382
      %v402 = vunpack.c.h.b16 %v382
      %v403 = vunpack.c.l.b16 %v383
      %v404 = vunpack.c.h.b16 %v383
      %v405 = vunpack.c.l.b16 %v384
      %v406 = vunpack.c.h.b16 %v384
      %v407 = vunpack.c.l.b16 %v385
      %v408 = vunpack.c.h.b16 %v385
      %v409 = vunpack.c.l.b16 %v386
      %v410 = vunpack.c.h.b16 %v386
      %v411 = vpack.c.b16 %v395, %v395
      %v412 = vpack.c.b16 %v396, %v396
      %v413 = vpack.c.b16 %v397, %v397
      %v414 = vpack.c.b16 %v398, %v398
      %v415 = vpack.c.b16 %v399, %v399
      %v416 = vpack.c.b16 %v400, %v400
      %v417 = vpack.c.b16 %v401, %v401
      %v418 = vpack.c.b16 %v402, %v402
      %v419 = vpack.c.b16 %v403, %v403
      %v420 = vpack.c.b16 %v404, %v404
      %v421 = vpack.c.b16 %v405, %v405
      %v422 = vpack.c.b16 %v406, %v406
      %v423 = vpack.c.b16 %v407, %v407
      %v424 = vpack.c.b16 %v408, %v408
      %v425 = vpack.c.b16 %v409, %v409
      %v426 = vpack.c.b16 %v410, %v410
      %443 = vst [vmem:[#allocation8] sm:$0xf] %v411
      %444 = vst [vmem:[#allocation8 + $0x4] sm:$0xf] %v412
      %445 = vst [vmem:[#allocation8 + $0x8] sm:$0xf] %v413
      %446 = vst [vmem:[#allocation8 + $0xc] sm:$0xf] %v414
      %447 = vst [vmem:[#allocation8 + $0x10] sm:$0xf] %v415
      %448 = vst [vmem:[#allocation8 + $0x14] sm:$0xf] %v416
      %449 = vst [vmem:[#allocation8 + $0x18] sm:$0xf] %v417
      %450 = vst [vmem:[#allocation8 + $0x1c] sm:$0xf] %v418
      %451 = vst [vmem:[#allocation8 + $0x20] sm:$0xf] %v419
      %452 = vst [vmem:[#allocation8 + $0x24] sm:$0xf] %v420
      %453 = vst [vmem:[#allocation8 + $0x28] sm:$0xf] %v421
      %454 = vst [vmem:[#allocation8 + $0x2c] sm:$0xf] %v422
      %455 = vst [vmem:[#allocation8 + $0x30] sm:$0xf] %v423
      %456 = vst [vmem:[#allocation8 + $0x34] sm:$0xf] %v424
      %457 = vst [vmem:[#allocation8 + $0x38] sm:$0xf] %v425
      %458 = vst [vmem:[#allocation8 + $0x3c] sm:$0xf] %v426
    $region29: #{tpu_custom_call.1} parent=1 // pred_fallthru
      _
    // Predicated region
    $region30: #{tpu_custom_call.1} parent=1 // pred_check
      _
    $region31: #{tpu_custom_call.1} parent=1 // pred_check_branch
      %460 = sbr.rel (0) target = $region33
    $region32: #{tpu_custom_call.1} parent=1 // pred_region
      %s462 = ssub.s32 1024, 1024
      %463 = vsyncadd [#allocation5], %s462
      %s464 = sshll.u32 [#allocation8], 4
      %s465 = int_to_ptr.vmem [resolvable:$true] %s464
      %470 = dma.vmem_to_hbm [thread:$0]  %s465, 1024, %s3, [#allocation5], 64, 64, 4
    $region33: #{tpu_custom_call.1} parent=1 // pred_fallthru
      _
    // Predicated region
    $region34: #{tpu_custom_call.1} parent=1 // pred_check
      _
    $region35: #{tpu_custom_call.1} parent=1 // pred_check_branch
      %472 = sbr.rel (0) target = $region37
    $region36: #{tpu_custom_call.1} parent=1 // pred_region
      %473 = dma.done [#allocation5], 1024
    $region37: #{tpu_custom_call.1} parent=1 // pred_fallthru
      _
    %474 = vsyncpa [#allocation4], 1
    %475 = vsyncpa [#allocation7], 1
    %476 = vsyncpa [#allocation5], 1

</llo_original>
